<compile_context>
chip_gen: v5e
topology: v5e:2x2
jax: 0.10.0
libtpu: 0.0.40
codegen_flags: <defaults>
</compile_context>

<pallas_src>
import functools

import jax
import jax.numpy as jnp
from jax import lax
from jax.experimental import pallas as pl
from jax.experimental.pallas import tpu as pltpu

EPS = 1e-5
LANE = 128
SUBLANE = 8


def _round_up(x, m):
    return (x + m - 1) // m * m


# ---------------------------------------------------------------------------
# Phase 1: conv (single K-folded matmul) + bias + ReLU for one (batch, L tile).
# Writes the ReLU(conv) tile in NCL layout and accumulates per-batch,
# per-channel sum / sum-of-squares for training-mode BatchNorm statistics.
# ---------------------------------------------------------------------------
def _phase1_kernel(x_ref, w_ref, b_ref, y_ref, sum_ref, ssq_ref, *,
                   ksize, tm, stride, dilation, l_out):
    # x_ref:   (c_in_pad, win_l)     halo window of this tile (NCL layout)
    # w_ref:   (c_pad, K*c_in_pad)   K-folded weights
    # b_ref:   (c_pad, 1)            conv bias
    # y_ref:   (c_pad, tm)           ReLU(conv) output tile (NCL)
    # sum_ref: (c_pad, 1)            per-batch running sum    (resident over j)
    # ssq_ref: (c_pad, 1)            per-batch running sumsq  (resident over j)
    j = pl.program_id(1)

    @pl.when(j == 0)
    def _init():
        sum_ref[...] = jnp.zeros_like(sum_ref)
        ssq_ref[...] = jnp.zeros_like(ssq_ref)

    # Load each tap directly from the windowed ref (no big temporary), stack
    # along the contracting (sublane) axis, and do one MXU matmul.
    taps = []
    for kk in range(ksize):
        off = kk * dilation
        if stride == 1:
            taps.append(x_ref[:, off:off + tm])
        else:
            taps.append(x_ref[:, pl.ds(off, tm, stride)])
    rhs = taps[0] if ksize == 1 else jnp.concatenate(taps, axis=0)

    acc = jnp.dot(w_ref[...], rhs, preferred_element_type=jnp.float32)
    y = jnp.maximum(acc + b_ref[...], 0.0)               # (c_pad, tm) f32

    n_j = pl.num_programs(1)

    # Fast path: full tiles need no masking.
    @pl.when(j < n_j - 1)
    def _stats_full():
        sum_ref[...] += jnp.sum(y, axis=1, keepdims=True)
        ssq_ref[...] += jnp.sum(y * y, axis=1, keepdims=True)

    # Only the last tile can contain padded rows (l >= l_out).
    @pl.when(j == n_j - 1)
    def _stats_masked():
        lidx = lax.broadcasted_iota(jnp.int32, (1, tm), 1) + j * tm
        yv = jnp.where(lidx < l_out, y, 0.0)
        sum_ref[...] += jnp.sum(yv, axis=1, keepdims=True)
        ssq_ref[...] += jnp.sum(yv * yv, axis=1, keepdims=True)

    y_ref[...] = y.astype(y_ref.dtype)


# ---------------------------------------------------------------------------
# Phase 2: apply the per-channel affine (gamma/sqrt(var+eps), shifted) to each
# (c_pad, tm) tile.  Independent per tile -> fully parallel grid; output is
# written directly in NCL layout (no wrapper transpose).
# ---------------------------------------------------------------------------
def _phase2_kernel(y_ref, scale_ref, shift_ref, o_ref):
    y = y_ref[...].astype(jnp.float32)
    o_ref[...] = (y * scale_ref[...] + shift_ref[...]).astype(o_ref.dtype)


def conv1d_relu_bn(x, weight, bias, gamma, beta, *, stride=1, padding=0,
                   dilation=1, eps=EPS, use_bf16=False, tile_rows=512):
    """Conv1d -> ReLU -> BatchNorm1d (training-mode batch statistics).

    x: (N, C_in, L) f32; weight: (C_out, C_in, K); bias/gamma/beta: (C_out,).
    Returns (N, C_out, L_out) f32 (same as the PyTorch module's forward).
    """
    n, c_in, length = x.shape
    c_out, _, ksize = weight.shape

    l_out = (length + 2 * padding - dilation * (ksize - 1) - 1) // stride + 1
    assert l_out > 0, "empty output"

    # ---- padded / lane-dense sizes --------------------------------------
    c_pad = _round_up(c_out, LANE)          # output channels on sublanes, /8 ok
    c_in_pad = _round_up(c_in, SUBLANE)     # keeps the in-kernel tap concat aligned

    tile_rows = max(LANE, _round_up(int(tile_rows), LANE))
    if c_pad >= 1024:                       # keep (c_pad, tm) f32 tiles modest
        tile_rows = min(tile_rows, 256)
    lo8 = _round_up(l_out, SUBLANE)
    tm = lo8 if lo8 <= tile_rows else tile_rows   # multiple of 128 when tiled
    l_out_pad = _round_up(l_out, tm)
    n_l_tiles = l_out_pad // tm

    win_l = (tm - 1) * stride + (ksize - 1) * dilation + 1
    l_in_needed = (l_out_pad - 1) * stride + (ksize - 1) * dilation + 1
    lp_total = max(length + 2 * padding, l_in_needed)

    compute_dtype = jnp.bfloat16 if use_bf16 else jnp.float32

    # ---- one-time layout prep (halo windows only; no NLC transpose) -----
    x_p = jnp.pad(x, ((0, 0), (0, c_in_pad - c_in),
                      (padding, lp_total - length - padding)))
    starts = jnp.arange(n_l_tiles, dtype=jnp.int32) * (tm * stride)
    idx = starts[:, None] + jnp.arange(win_l, dtype=jnp.int32)[None, :]
    x_win = jnp.take(x_p, idx, axis=2)                      # (N, c_in_pad, T, win_l)
    x_win = jnp.swapaxes(x_win, 1, 2).astype(compute_dtype)  # (N, T, c_in_pad, win_l)

    # Weights folded over K: column (kk*c_in_pad + ci) multiplies tap kk,
    # channel ci -- matching the in-kernel tap concatenation order.
    w2 = jnp.transpose(weight, (0, 2, 1))                    # (C_out, K, C_in)
    w2 = jnp.pad(w2, ((0, c_pad - c_out), (0, 0), (0, c_in_pad - c_in)))
    w2 = w2.reshape(c_pad, ksize * c_in_pad).astype(compute_dtype)
    b_col = jnp.pad(bias, (0, c_pad - c_out)).reshape(c_pad, 1).astype(jnp.float32)

    cd_b = 2 if use_bf16 else 4
    f32b = 4

    # ---- phase 1: conv + ReLU tiles + per-batch sum/sumsq ----------------
    kern1 = functools.partial(_phase1_kernel, ksize=ksize, tm=tm,
                              stride=stride, dilation=dilation, l_out=l_out)

    cost1 = pl.CostEstimate(
        flops=2 * n * l_out_pad * ksize * c_in_pad * c_pad,
        transcendentals=0,
        bytes_accessed=(x_win.size * cd_b + w2.size * cd_b + b_col.size * f32b
                        + n * c_pad * l_out_pad * cd_b + 2 * n * c_pad * f32b))

    y, bsum, bssq = pl.pallas_call(
        kern1,
        out_shape=(
            jax.ShapeDtypeStruct((n, c_pad, l_out_pad), compute_dtype),
            jax.ShapeDtypeStruct((n, c_pad, 1), jnp.float32),
            jax.ShapeDtypeStruct((n, c_pad, 1), jnp.float32),
        ),
        grid=(n, n_l_tiles),
        in_specs=[
            # Per-tile halo window: a few hundred KiB of VMEM instead of the
            # whole sequence per batch element.
            pl.BlockSpec((None, None, c_in_pad, win_l), lambda b, j: (b, j, 0, 0)),
            pl.BlockSpec((c_pad, ksize * c_in_pad), lambda b, j: (0, 0)),
            pl.BlockSpec((c_pad, 1), lambda b, j: (0, 0)),
        ],
        out_specs=(
            pl.BlockSpec((None, c_pad, tm), lambda b, j: (b, 0, j)),
            pl.BlockSpec((None, c_pad, 1), lambda b, j: (b, 0, 0)),  # resident over j
            pl.BlockSpec((None, c_pad, 1), lambda b, j: (b, 0, 0)),  # resident over j
        ),
        compiler_params=pltpu.CompilerParams(
            # Per-batch accumulators -> batch axis is safe to shard across
            # TensorCores (v7x megacore); only the L-tile axis carries state.
            dimension_semantics=("parallel", "arbitrary"),
            vmem_limit_bytes=32 * 1024 * 1024),
        cost_estimate=cost1,
    )(x_win, w2, b_col)

    # ---- tiny per-channel stats -> affine scale/shift (plain XLA) -------
    r = n * l_out                                    # real (unpadded) rows
    ssum = jnp.sum(bsum, axis=0)                     # (c_pad, 1)
    sssq = jnp.sum(bssq, axis=0)                     # (c_pad, 1)
    mean = ssum / r
    var = jnp.maximum(sssq / r - mean * mean, 0.0)   # biased variance (training BN)
    inv = lax.rsqrt(var + eps)
    g_col = jnp.pad(gamma, (0, c_pad - c_out)).reshape(c_pad, 1)
    bt_col = jnp.pad(beta, (0, c_pad - c_out)).reshape(c_pad, 1)
    scale = (g_col * inv).astype(jnp.float32)
    shift = (bt_col - mean * g_col * inv).astype(jnp.float32)

    # ---- phase 2: normalize tiles, write NCL directly --------------------
    cost2 = pl.CostEstimate(
        flops=2 * n * c_pad * l_out_pad,
        transcendentals=0,
        bytes_accessed=n * c_pad * l_out_pad * (cd_b + f32b) + 2 * c_pad * f32b)

    out_pad = pl.pallas_call(
        _phase2_kernel,
        out_shape=jax.ShapeDtypeStruct((n, c_pad, l_out_pad), jnp.float32),
        grid=(n, n_l_tiles),
        in_specs=[
            pl.BlockSpec((None, c_pad, tm), lambda b, j: (b, 0, j)),
            pl.BlockSpec((c_pad, 1), lambda b, j: (0, 0)),
            pl.BlockSpec((c_pad, 1), lambda b, j: (0, 0)),
        ],
        out_specs=pl.BlockSpec((None, c_pad, tm), lambda b, j: (b, 0, j)),
        compiler_params=pltpu.CompilerParams(
            dimension_semantics=("parallel", "parallel"),
            vmem_limit_bytes=32 * 1024 * 1024),
        cost_estimate=cost2,
    )(y, scale, shift)

    # Output is already in PyTorch NCL layout; just drop channel/length padding.
    return out_pad[:, :c_out, :l_out]


# TODO(synk): nn.BatchNorm1d running_mean/running_var buffer updates (a
# training-time side effect) are not produced; the returned tensor does not
# depend on them.
def _reference(x, weight, bias, gamma, beta, *, stride, padding, dilation):
    y = lax.conv_general_dilated(
        x, weight,
        window_strides=(stride,),
        padding=[(padding, padding)],
        rhs_dilation=(dilation,),
        dimension_numbers=("NCH", "OIH", "NCH"),
    ) + bias[None, :, None]
    y = jnp.maximum(y, 0.0)
    mean = jnp.mean(y, axis=(0, 2), keepdims=True)
    var = jnp.mean((y - mean) ** 2, axis=(0, 2), keepdims=True)
    y_hat = (y - mean) * lax.rsqrt(var + EPS)
    return y_hat * gamma[None, :, None] + beta[None, :, None]


if __name__ == "__main__":
    # Shapes consistent with Conv1dReluBn(in_channels=4, out_channels=8,
    # kernel_size=3, stride=1, padding=1, dilation=1, bias=True).
    N, C_IN, C_OUT, L, K = 2, 4, 8, 16, 3
    STRIDE, PADDING, DILATION = 1, 1, 1

    key = jax.random.PRNGKey(0)
    kx, kw, kb, kg, kbt = jax.random.split(key, 5)
    x = jax.random.normal(kx, (N, C_IN, L), dtype=jnp.float32)
    weight = jax.random.normal(kw, (C_OUT, C_IN, K), dtype=jnp.float32) * 0.1
    bias = jax.random.normal(kb, (C_OUT,), dtype=jnp.float32) * 0.1
    # BN affine params (PyTorch default is gamma=1, beta=0; perturb so the
    # affine path is exercised).
    gamma = 1.0 + 0.1 * jax.random.normal(kg, (C_OUT,), dtype=jnp.float32)
    beta = 0.1 * jax.random.normal(kbt, (C_OUT,), dtype=jnp.float32)

    ref = _reference(x, weight, bias, gamma, beta,
                     stride=STRIDE, padding=PADDING, dilation=DILATION)

    # f32 path (default): strict tolerance.
    out = conv1d_relu_bn(x, weight, bias, gamma, beta,
                         stride=STRIDE, padding=PADDING, dilation=DILATION)
    out = jax.block_until_ready(out)
    assert out.shape == (N, C_OUT, L)
    assert jnp.allclose(out, ref, atol=1e-4, rtol=1e-4)

    # bf16 MXU-operand / bf16-intermediate path (recommended default on v5e):
    # f32 accumulation, looser tolerance.
    out_bf16 = conv1d_relu_bn(x, weight, bias, gamma, beta,
                              stride=STRIDE, padding=PADDING, dilation=DILATION,
                              use_bf16=True)
    out_bf16 = jax.block_until_ready(out_bf16)
    assert out_bf16.shape == (N, C_OUT, L)
    assert jnp.allclose(out_bf16, ref, atol=1.5e-1, rtol=1.5e-1)

    print("KERNEL_OK")
</pallas_src>

<mosaic_0001>
module attributes {stable_mosaic.version = 11 : i64} {
  func.func @_phase1_kernel(%arg0: i32, %arg1: i32, %arg2: memref<1x1x8x18xf32, #tpu.memory_space<vmem>>, %arg3: memref<128x24xf32, #tpu.memory_space<vmem>>, %arg4: memref<128x1xf32, #tpu.memory_space<vmem>>, %arg5: memref<1x128x16xf32, #tpu.memory_space<vmem>>, %arg6: memref<1x128x1xf32, #tpu.memory_space<vmem>>, %arg7: memref<1x128x1xf32, #tpu.memory_space<vmem>>) attributes {dimension_semantics = [#tpu.dimension_semantics<parallel>, #tpu.dimension_semantics<arbitrary>], iteration_bounds = array<i64: 2, 1>, scalar_prefetch = 0 : i64, scratch_operands = 0 : i64, tpu.core_type = #tpu.core_type<tc>, window_params = [{transform_indices = @transform_0, window_bounds = array<i64: 1, 1, 8, 18>}, {pipeline_mode = #tpu.pipeline_mode<synchronous>, transform_indices = @transform_1, window_bounds = array<i64: 128, 24>}, {pipeline_mode = #tpu.pipeline_mode<synchronous>, transform_indices = @transform_2, window_bounds = array<i64: 128, 1>}, {transform_indices = @transform_3, window_bounds = array<i64: 1, 128, 16>}, {transform_indices = @transform_4, window_bounds = array<i64: 1, 128, 1>}, {transform_indices = @transform_5, window_bounds = array<i64: 1, 128, 1>}]} {
    %c0_i32 = arith.constant 0 : i32
    %0 = arith.cmpi eq, %arg1, %c0_i32 : i32
    %1 = arith.extui %0 : i1 to i32
    %c0_i32_0 = arith.constant 0 : i32
    %2 = arith.cmpi ne, %1, %c0_i32_0 : i32
    scf.if %2 {
      %cst_22 = arith.constant 0.000000e+00 : f32
      %26 = vector.broadcast %cst_22 : f32 to vector<128x1xf32>
      %c0_23 = arith.constant 0 : index
      %c0_24 = arith.constant 0 : index
      %c0_25 = arith.constant 0 : index
      %27 = vector.load %arg6[%c0_23, %c0_24, %c0_25] : memref<1x128x1xf32, #tpu.memory_space<vmem>>, vector<1x128x1xf32>
      %28 = vector.shape_cast %27 : vector<1x128x1xf32> to vector<128x1xf32>
      %29 = vector.shape_cast %26 : vector<128x1xf32> to vector<1x128x1xf32>
      tpu.vector_store %arg6[%c0_23, %c0_24, %c0_25], %29 {strides = array<i32>} : memref<1x128x1xf32, #tpu.memory_space<vmem>>, vector<1x128x1xf32>,
      %cst_26 = arith.constant 0.000000e+00 : f32
      %30 = vector.broadcast %cst_26 : f32 to vector<128x1xf32>
      %c0_27 = arith.constant 0 : index
      %c0_28 = arith.constant 0 : index
      %c0_29 = arith.constant 0 : index
      %31 = vector.load %arg7[%c0_27, %c0_28, %c0_29] : memref<1x128x1xf32, #tpu.memory_space<vmem>>, vector<1x128x1xf32>
      %32 = vector.shape_cast %31 : vector<1x128x1xf32> to vector<128x1xf32>
      %33 = vector.shape_cast %30 : vector<128x1xf32> to vector<1x128x1xf32>
      tpu.vector_store %arg7[%c0_27, %c0_28, %c0_29], %33 {strides = array<i32>} : memref<1x128x1xf32, #tpu.memory_space<vmem>>, vector<1x128x1xf32>,
    } else {
    }
    %c0 = arith.constant 0 : index
    %c0_1 = arith.constant 0 : index
    %c0_2 = arith.constant 0 : index
    %c0_3 = arith.constant 0 : index
    %3 = vector.load %arg2[%c0, %c0_1, %c0_2, %c0_3] : memref<1x1x8x18xf32, #tpu.memory_space<vmem>>, vector<1x1x8x16xf32>
    %4 = vector.shape_cast %3 : vector<1x1x8x16xf32> to vector<8x16xf32>
    %c0_4 = arith.constant 0 : index
    %c0_5 = arith.constant 0 : index
    %c0_6 = arith.constant 0 : index
    %c1 = arith.constant 1 : index
    %5 = vector.load %arg2[%c0_4, %c0_5, %c0_6, %c1] : memref<1x1x8x18xf32, #tpu.memory_space<vmem>>, vector<1x1x8x16xf32>
    %6 = vector.shape_cast %5 : vector<1x1x8x16xf32> to vector<8x16xf32>
    %c0_7 = arith.constant 0 : index
    %c0_8 = arith.constant 0 : index
    %c0_9 = arith.constant 0 : index
    %c2 = arith.constant 2 : index
    %7 = vector.load %arg2[%c0_7, %c0_8, %c0_9, %c2] : memref<1x1x8x18xf32, #tpu.memory_space<vmem>>, vector<1x1x8x16xf32>
    %8 = vector.shape_cast %7 : vector<1x1x8x16xf32> to vector<8x16xf32>
    %9 = tpu.concatenate %4, %6, %8 in 0 : vector<8x16xf32>, vector<8x16xf32>, vector<8x16xf32> -> vector<24x16xf32>
    %c0_10 = arith.constant 0 : index
    %c0_11 = arith.constant 0 : index
    %10 = vector.load %arg3[%c0_10, %c0_11] : memref<128x24xf32, #tpu.memory_space<vmem>>, vector<128x24xf32>
    %cst = arith.constant dense<0.000000e+00> : vector<128x16xf32>
    %11 = tpu.matmul %10, %9, %cst {dimension_numbers = #tpu.dot_dimension_numbers<[1], [0], [0], [1], [0, 0, 1, 1], [], []>} : vector<128x24xf32>, vector<24x16xf32>, vector<128x16xf32> -> vector<128x16xf32>
    %c0_12 = arith.constant 0 : index
    %c0_13 = arith.constant 0 : index
    %12 = vector.load %arg4[%c0_12, %c0_13] : memref<128x1xf32, #tpu.memory_space<vmem>>, vector<128x1xf32>
    %13 = vector.broadcast %12 : vector<128x1xf32> to vector<128x16xf32>
    %14 = arith.addf %11, %13 : vector<128x16xf32>
    %cst_14 = arith.constant 0.000000e+00 : f32
    %15 = vector.broadcast %cst_14 : f32 to vector<128x16xf32>
    %16 = arith.maximumf %14, %15 : vector<128x16xf32>
    %c0_i32_15 = arith.constant 0 : i32
    %17 = arith.cmpi slt, %arg1, %c0_i32_15 : i32
    %18 = arith.extui %17 : i1 to i32
    %c0_i32_16 = arith.constant 0 : i32
    %19 = arith.cmpi ne, %18, %c0_i32_16 : i32
    scf.if %19 {
      %c0_22 = arith.constant 0 : index
      %c0_23 = arith.constant 0 : index
      %c0_24 = arith.constant 0 : index
      %26 = vector.load %arg6[%c0_22, %c0_23, %c0_24] : memref<1x128x1xf32, #tpu.memory_space<vmem>>, vector<1x128x1xf32>
      %27 = vector.shape_cast %26 : vector<1x128x1xf32> to vector<128x1xf32>
      %cst_25 = arith.constant dense<0.000000e+00> : vector<128xf32>
      %28 = vector.multi_reduction <add>, %16, %cst_25 [1] : vector<128x16xf32> to vector<128xf32>
      %29 = vector.shape_cast %28 : vector<128xf32> to vector<128x1xf32>
      %30 = arith.addf %27, %29 : vector<128x1xf32>
      %c0_26 = arith.constant 0 : index
      %c0_27 = arith.constant 0 : index
      %c0_28 = arith.constant 0 : index
      %31 = vector.load %arg6[%c0_26, %c0_27, %c0_28] : memref<1x128x1xf32, #tpu.memory_space<vmem>>, vector<1x128x1xf32>
      %32 = vector.shape_cast %31 : vector<1x128x1xf32> to vector<128x1xf32>
      %33 = vector.shape_cast %30 : vector<128x1xf32> to vector<1x128x1xf32>
      tpu.vector_store %arg6[%c0_26, %c0_27, %c0_28], %33 {strides = array<i32>} : memref<1x128x1xf32, #tpu.memory_space<vmem>>, vector<1x128x1xf32>,
      %c0_29 = arith.constant 0 : index
      %c0_30 = arith.constant 0 : index
      %c0_31 = arith.constant 0 : index
      %34 = vector.load %arg7[%c0_29, %c0_30, %c0_31] : memref<1x128x1xf32, #tpu.memory_space<vmem>>, vector<1x128x1xf32>
      %35 = vector.shape_cast %34 : vector<1x128x1xf32> to vector<128x1xf32>
      %36 = arith.mulf %16, %16 : vector<128x16xf32>
      %cst_32 = arith.constant dense<0.000000e+00> : vector<128xf32>
      %37 = vector.multi_reduction <add>, %36, %cst_32 [1] : vector<128x16xf32> to vector<128xf32>
      %38 = vector.shape_cast %37 : vector<128xf32> to vector<128x1xf32>
      %39 = arith.addf %35, %38 : vector<128x1xf32>
      %c0_33 = arith.constant 0 : index
      %c0_34 = arith.constant 0 : index
      %c0_35 = arith.constant 0 : index
      %40 = vector.load %arg7[%c0_33, %c0_34, %c0_35] : memref<1x128x1xf32, #tpu.memory_space<vmem>>, vector<1x128x1xf32>
      %41 = vector.shape_cast %40 : vector<1x128x1xf32> to vector<128x1xf32>
      %42 = vector.shape_cast %39 : vector<128x1xf32> to vector<1x128x1xf32>
      tpu.vector_store %arg7[%c0_33, %c0_34, %c0_35], %42 {strides = array<i32>} : memref<1x128x1xf32, #tpu.memory_space<vmem>>, vector<1x128x1xf32>,
    } else {
    }
    %c0_i32_17 = arith.constant 0 : i32
    %20 = arith.cmpi eq, %arg1, %c0_i32_17 : i32
    %21 = arith.extui %20 : i1 to i32
    %c0_i32_18 = arith.constant 0 : i32
    %22 = arith.cmpi ne, %21, %c0_i32_18 : i32
    scf.if %22 {
      %26 = tpu.iota {dimensions = array<i32: 1>} : vector<1x16xi32>
      %c16_i32 = arith.constant 16 : i32
      %27 = arith.muli %arg1, %c16_i32 : i32
      %28 = vector.broadcast %27 : i32 to vector<1x16xi32>
      %29 = arith.addi %26, %28 : vector<1x16xi32>
      %c16_i32_22 = arith.constant 16 : i32
      %30 = vector.broadcast %c16_i32_22 : i32 to vector<1x16xi32>
      %31 = arith.cmpi slt, %29, %30 : vector<1x16xi32>
      %cst_23 = arith.constant 0.000000e+00 : f32
      %32 = vector.shape_cast %31 : vector<1x16xi1> to vector<1x16xi1>
      %33 = vector.broadcast %32 : vector<1x16xi1> to vector<128x16xi1>
      %34 = vector.broadcast %cst_23 : f32 to vector<128x16xf32>
      %35 = arith.select %33, %16, %34 : vector<128x16xi1>, vector<128x16xf32>
      %c0_24 = arith.constant 0 : index
      %c0_25 = arith.constant 0 : index
      %c0_26 = arith.constant 0 : index
      %36 = vector.load %arg6[%c0_24, %c0_25, %c0_26] : memref<1x128x1xf32, #tpu.memory_space<vmem>>, vector<1x128x1xf32>
      %37 = vector.shape_cast %36 : vector<1x128x1xf32> to vector<128x1xf32>
      %cst_27 = arith.constant dense<0.000000e+00> : vector<128xf32>
      %38 = vector.multi_reduction <add>, %35, %cst_27 [1] : vector<128x16xf32> to vector<128xf32>
      %39 = vector.shape_cast %38 : vector<128xf32> to vector<128x1xf32>
      %40 = arith.addf %37, %39 : vector<128x1xf32>
      %c0_28 = arith.constant 0 : index
      %c0_29 = arith.constant 0 : index
      %c0_30 = arith.constant 0 : index
      %41 = vector.load %arg6[%c0_28, %c0_29, %c0_30] : memref<1x128x1xf32, #tpu.memory_space<vmem>>, vector<1x128x1xf32>
      %42 = vector.shape_cast %41 : vector<1x128x1xf32> to vector<128x1xf32>
      %43 = vector.shape_cast %40 : vector<128x1xf32> to vector<1x128x1xf32>
      tpu.vector_store %arg6[%c0_28, %c0_29, %c0_30], %43 {strides = array<i32>} : memref<1x128x1xf32, #tpu.memory_space<vmem>>, vector<1x128x1xf32>,
      %c0_31 = arith.constant 0 : index
      %c0_32 = arith.constant 0 : index
      %c0_33 = arith.constant 0 : index
      %44 = vector.load %arg7[%c0_31, %c0_32, %c0_33] : memref<1x128x1xf32, #tpu.memory_space<vmem>>, vector<1x128x1xf32>
      %45 = vector.shape_cast %44 : vector<1x128x1xf32> to vector<128x1xf32>
      %46 = arith.mulf %35, %35 : vector<128x16xf32>
      %cst_34 = arith.constant dense<0.000000e+00> : vector<128xf32>
      %47 = vector.multi_reduction <add>, %46, %cst_34 [1] : vector<128x16xf32> to vector<128xf32>
      %48 = vector.shape_cast %47 : vector<128xf32> to vector<128x1xf32>
      %49 = arith.addf %45, %48 : vector<128x1xf32>
      %c0_35 = arith.constant 0 : index
      %c0_36 = arith.constant 0 : index
      %c0_37 = arith.constant 0 : index
      %50 = vector.load %arg7[%c0_35, %c0_36, %c0_37] : memref<1x128x1xf32, #tpu.memory_space<vmem>>, vector<1x128x1xf32>
      %51 = vector.shape_cast %50 : vector<1x128x1xf32> to vector<128x1xf32>
      %52 = vector.shape_cast %49 : vector<128x1xf32> to vector<1x128x1xf32>
      tpu.vector_store %arg7[%c0_35, %c0_36, %c0_37], %52 {strides = array<i32>} : memref<1x128x1xf32, #tpu.memory_space<vmem>>, vector<1x128x1xf32>,
    } else {
    }
    %c0_19 = arith.constant 0 : index
    %c0_20 = arith.constant 0 : index
    %c0_21 = arith.constant 0 : index
    %23 = vector.load %arg5[%c0_19, %c0_20, %c0_21] : memref<1x128x16xf32, #tpu.memory_space<vmem>>, vector<1x128x16xf32>
    %24 = vector.shape_cast %23 : vector<1x128x16xf32> to vector<128x16xf32>
    %25 = vector.shape_cast %16 : vector<128x16xf32> to vector<1x128x16xf32>
    tpu.vector_store %arg5[%c0_19, %c0_20, %c0_21], %25 {strides = array<i32>} : memref<1x128x16xf32, #tpu.memory_space<vmem>>, vector<1x128x16xf32>,
    return
  }
  func.func @transform_0(%arg0: i32, %arg1: i32) -> (i32, i32, i32, i32) {
    %c0_i32 = arith.constant 0 : i32
    %c0_i32_0 = arith.constant 0 : i32
    %c0_i32_1 = arith.constant 0 : i32
    return %arg0, %arg1, %c0_i32, %c0_i32_0 : i32, i32, i32, i32
  }
  func.func @transform_1(%arg0: i32, %arg1: i32) -> (i32, i32) {
    %c0_i32 = arith.constant 0 : i32
    %c0_i32_0 = arith.constant 0 : i32
    %c0_i32_1 = arith.constant 0 : i32
    return %c0_i32, %c0_i32_0 : i32, i32
  }
  func.func @transform_2(%arg0: i32, %arg1: i32) -> (i32, i32) {
    %c0_i32 = arith.constant 0 : i32
    %c0_i32_0 = arith.constant 0 : i32
    %c0_i32_1 = arith.constant 0 : i32
    return %c0_i32, %c0_i32_0 : i32, i32
  }
  func.func @transform_3(%arg0: i32, %arg1: i32) -> (i32, i32, i32) {
    %c0_i32 = arith.constant 0 : i32
    %c0_i32_0 = arith.constant 0 : i32
    return %arg0, %c0_i32, %arg1 : i32, i32, i32
  }
  func.func @transform_4(%arg0: i32, %arg1: i32) -> (i32, i32, i32) {
    %c0_i32 = arith.constant 0 : i32
    %c0_i32_0 = arith.constant 0 : i32
    %c0_i32_1 = arith.constant 0 : i32
    return %arg0, %c0_i32, %c0_i32_0 : i32, i32, i32
  }
  func.func @transform_5(%arg0: i32, %arg1: i32) -> (i32, i32, i32) {
    %c0_i32 = arith.constant 0 : i32
    %c0_i32_0 = arith.constant 0 : i32
    %c0_i32_1 = arith.constant 0 : i32
    return %arg0, %c0_i32, %c0_i32_0 : i32, i32, i32
  }
}

</mosaic_0001>

<llo_original>
// kernel: tpu_custom_call.1
$region0: #{tpu_custom_call.1}
  #allocation0 [shape = 'u32[]', space=smem, size = 0x4, offset = 0x4, fixed_abs, tag = 'smem constant byte address 0x4 - core index']
  #allocation1 [shape = 'u32[72,128]{1,0:T(1,128)}', space=vmem, size = 0x9000, scoped, tag = 'internal scratch']
  %s0 = inlined_call_operand.vmem [shape: f32[2,1,8,18], index: 0, kind: input, shape index: {}]
  %s1 = inlined_call_operand.vmem [shape: f32[128,24], index: 1, kind: input, shape index: {}]
  %s2 = inlined_call_operand.vmem [shape: f32[128,1], index: 2, kind: input, shape index: {}]
  %s3 = inlined_call_operand.vmem [shape: f32[2,128,16], index: 3, kind: output, shape index: {0}]
  %s4 = inlined_call_operand.vmem [shape: f32[2,128,1], index: 4, kind: output, shape index: {1}]
  %s5 = inlined_call_operand.vmem [shape: f32[2,128,1], index: 5, kind: output, shape index: {2}]
  %6 = xla_tuple %s3, %s4, %s5
  %s7 = sld [smem:[#allocation0]]
  $region73: #{tpu_custom_call.1} parent=0
    _
  %s9 = ssub.s32 1, %s7
  %s10 = scalar_select 0, %s9, %s7
  loop: start=0, step=1, limit=4
  $region2: #{tpu_custom_call.1} parent=0 // loop_pre_header
    _
  $region3: #{tpu_custom_call.1} parent=0 // loop_header
    %s12 = sphi 0, %s16
    %p13 = scmp.ge.s32.totalorder %s12, 4
    %s19 = sphi 0, %s31
    %s20 = sphi 0, %s27
    %s21 = sphi 0, %s19
    %s22 = sphi 0, %s20
    %s23 = sphi 0, %s21
    %s24 = sphi 0, %s22
    %s36 = sphi 0, %s38
    %s39 = sphi 0, %s36
    %s40 = sphi 0, %s39
    %s56 = sphi 0, %s40
    %s60 = sphi 0, %s60
    %s62 = sphi 0, %s60
    %s63 = sphi 0, %s62
    %s77 = sphi 0, %s63
    %s81 = sphi 0, %s81
    %s83 = sphi 0, %s81
    %s84 = sphi 0, %s83
    %s98 = sphi 0, %s84
    %s106 = sphi 0, %s108
    %s109 = sphi 0, %s106
    %s110 = sphi 0, %s109
    %s126 = sphi 0, %s110
    %s132 = sphi 0, %s134
    %s135 = sphi 0, %s132
    %s136 = sphi 0, %s135
    %s152 = sphi 0, %s136
    %s158 = sphi 0, %s160
    %s161 = sphi 0, %s158
    %s162 = sphi 0, %s161
    %s178 = sphi 0, %s162
  $region4: #{tpu_custom_call.1} parent=0 // loop_header_branch
    %15 = sbr.rel (%p13) target = $region8
  $region5: #{tpu_custom_call.1} parent=0 // loop_body
    %s17 = ssub.s32 %s12, 1
    %s18 = ssub.s32 %s12, 2
    %s25 = sadd.s32 1, %s20
    %p26 = scmp.ge.s32.totalorder %s25, 1
    %s27 = scalar_select %p26, 0, %s25
    %s28 = sadd.s32 1, %s19
    %s29 = scalar_select %p26, %s28, %s19
    %p30 = scmp.ge.s32.totalorder %s29, 2
    %s31 = scalar_select %p30, 0, %s29
    %s32 = ssub.s32 %s19, %s31
    %s33 = ssub.s32 %s20, %s27
    %s34 = sor.u32 %s32, %s33
    %p35 = scmp.eq.s32.totalorder %s34, 0
    %s37 = sadd.s32 %s36, 1
    %s38 = scalar_select %p35, %s36, %s37
    %p41 = pneg %p35
    %p42 = scmp.eq.s32.totalorder %s12, 1
    %p43 = por %p41, %p42
    %p44 = scmp.ne.s32.totalorder %s36, %s39
    %p45 = scmp.eq.s32.totalorder %s12, 0
    %p46 = por %p44, %p45
    %p47 = scmp.ne.s32.totalorder %s36, %s39
    %p48 = scmp.eq.s32.totalorder %s17, 1
    %p49 = por %p47, %p48
    %p50 = scmp.ne.s32.totalorder %s39, %s40
    %p51 = scmp.eq.s32.totalorder %s17, 0
    %p52 = por %p50, %p51
    %p53 = scmp.ne.s32.totalorder %s39, %s40
    %p54 = scmp.eq.s32.totalorder %s18, 1
    %p55 = por %p53, %p54
    %p57 = scmp.ne.s32.totalorder %s40, %s56
    %p58 = scmp.eq.s32.totalorder %s18, 0
    %p59 = por %p57, %p58
    %s61 = sadd.s32 %s60, 1
    %p64 = scmp.eq.s32.totalorder %s12, 1
    %p65 = scmp.ne.s32.totalorder %s60, %s62
    %p66 = scmp.eq.s32.totalorder %s12, 0
    %p67 = por %p65, %p66
    %p68 = scmp.ne.s32.totalorder %s60, %s62
    %p69 = scmp.eq.s32.totalorder %s17, 1
    %p70 = por %p68, %p69
    %p71 = scmp.ne.s32.totalorder %s62, %s63
    %p72 = scmp.eq.s32.totalorder %s17, 0
    %p73 = por %p71, %p72
    %p74 = scmp.ne.s32.totalorder %s62, %s63
    %p75 = scmp.eq.s32.totalorder %s18, 1
    %p76 = por %p74, %p75
    %p78 = scmp.ne.s32.totalorder %s63, %s77
    %p79 = scmp.eq.s32.totalorder %s18, 0
    %p80 = por %p78, %p79
    %s82 = sadd.s32 %s81, 1
    %p85 = scmp.eq.s32.totalorder %s12, 1
    %p86 = scmp.ne.s32.totalorder %s81, %s83
    %p87 = scmp.eq.s32.totalorder %s12, 0
    %p88 = por %p86, %p87
    %p89 = scmp.ne.s32.totalorder %s81, %s83
    %p90 = scmp.eq.s32.totalorder %s17, 1
    %p91 = por %p89, %p90
    %p92 = scmp.ne.s32.totalorder %s83, %s84
    %p93 = scmp.eq.s32.totalorder %s17, 0
    %p94 = por %p92, %p93
    %p95 = scmp.ne.s32.totalorder %s83, %s84
    %p96 = scmp.eq.s32.totalorder %s18, 1
    %p97 = por %p95, %p96
    %p99 = scmp.ne.s32.totalorder %s84, %s98
    %p100 = scmp.eq.s32.totalorder %s18, 0
    %p101 = por %p99, %p100
    %s102 = ssub.s32 %s19, %s31
    %s103 = ssub.s32 %s20, %s27
    %s104 = sor.u32 %s102, %s103
    %p105 = scmp.eq.s32.totalorder %s104, 0
    %s107 = sadd.s32 %s106, 1
    %s108 = scalar_select %p105, %s106, %s107
    %p111 = pneg %p105
    %p112 = scmp.eq.s32.totalorder %s12, 1
    %p113 = por %p111, %p112
    %p114 = scmp.ne.s32.totalorder %s106, %s109
    %p115 = scmp.eq.s32.totalorder %s12, 0
    %p116 = por %p114, %p115
    %p117 = scmp.ne.s32.totalorder %s106, %s109
    %p118 = scmp.eq.s32.totalorder %s17, 1
    %p119 = por %p117, %p118
    %p120 = scmp.ne.s32.totalorder %s109, %s110
    %p121 = scmp.eq.s32.totalorder %s17, 0
    %p122 = por %p120, %p121
    %p123 = scmp.ne.s32.totalorder %s109, %s110
    %p124 = scmp.eq.s32.totalorder %s18, 1
    %p125 = por %p123, %p124
    %p127 = scmp.ne.s32.totalorder %s110, %s126
    %p128 = scmp.eq.s32.totalorder %s18, 0
    %p129 = por %p127, %p128
    %s130 = ssub.s32 %s19, %s31
    %p131 = scmp.eq.s32.totalorder %s130, 0
    %s133 = sadd.s32 %s132, 1
    %s134 = scalar_select %p131, %s132, %s133
    %p137 = pneg %p131
    %p138 = scmp.eq.s32.totalorder %s12, 1
    %p139 = por %p137, %p138
    %p140 = scmp.ne.s32.totalorder %s132, %s135
    %p141 = scmp.eq.s32.totalorder %s12, 0
    %p142 = por %p140, %p141
    %p143 = scmp.ne.s32.totalorder %s132, %s135
    %p144 = scmp.eq.s32.totalorder %s17, 1
    %p145 = por %p143, %p144
    %p146 = scmp.ne.s32.totalorder %s135, %s136
    %p147 = scmp.eq.s32.totalorder %s17, 0
    %p148 = por %p146, %p147
    %p149 = scmp.ne.s32.totalorder %s135, %s136
    %p150 = scmp.eq.s32.totalorder %s18, 1
    %p151 = por %p149, %p150
    %p153 = scmp.ne.s32.totalorder %s136, %s152
    %p154 = scmp.eq.s32.totalorder %s18, 0
    %p155 = por %p153, %p154
    %s156 = ssub.s32 %s19, %s31
    %p157 = scmp.eq.s32.totalorder %s156, 0
    %s159 = sadd.s32 %s158, 1
    %s160 = scalar_select %p157, %s158, %s159
    %p163 = pneg %p157
    %p164 = scmp.eq.s32.totalorder %s12, 1
    %p165 = por %p163, %p164
    %p166 = scmp.ne.s32.totalorder %s158, %s161
    %p167 = scmp.eq.s32.totalorder %s12, 0
    %p168 = por %p166, %p167
    %p169 = scmp.ne.s32.totalorder %s158, %s161
    %p170 = scmp.eq.s32.totalorder %s17, 1
    %p171 = por %p169, %p170
    %p172 = scmp.ne.s32.totalorder %s161, %s162
    %p173 = scmp.eq.s32.totalorder %s17, 0
    %p174 = por %p172, %p173
    %p175 = scmp.ne.s32.totalorder %s161, %s162
    %p176 = scmp.eq.s32.totalorder %s18, 1
    %p177 = por %p175, %p176
    %p179 = scmp.ne.s32.totalorder %s162, %s178
    %p180 = scmp.eq.s32.totalorder %s18, 0
    %p181 = por %p179, %p180
    %p182 = scmp.le.s32.totalorder 1, %s12
    %p183 = scmp.lt.s32.totalorder %s12, 3
    %p184 = pnand %p182, %p183
    %p185 = pneg %p184
    // Predicated region
    $region9: #{tpu_custom_call.1} parent=5 // pred_check
      _
    $region10: #{tpu_custom_call.1} parent=5 // pred_check_branch
      %187 = sbr.rel (%p184) target = $region12
    $region11: #{tpu_custom_call.1} parent=5 // pred_region
      %s188 = ssub.s32 %s12, 1
      // Predicated region
      $region13: #{tpu_custom_call.1} parent=11 // pred_check
        %p189 = pneg %p73
      $region14: #{tpu_custom_call.1} parent=11 // pred_check_branch
        %191 = sbr.rel (%p189) target = $region16
      $region15: #{tpu_custom_call.1} parent=11 // pred_region
        _
      $region16: #{tpu_custom_call.1} parent=11 // pred_fallthru
        _
      // Predicated region
      $region17: #{tpu_custom_call.1} parent=11 // pred_check
        %p192 = pneg %p94
      $region18: #{tpu_custom_call.1} parent=11 // pred_check_branch
        %194 = sbr.rel (%p192) target = $region20
      $region19: #{tpu_custom_call.1} parent=11 // pred_region
        _
      $region20: #{tpu_custom_call.1} parent=11 // pred_fallthru
        _
    $region12: #{tpu_custom_call.1} parent=5 // pred_fallthru
      _
    %p195 = scmp.lt.s32.totalorder %s12, 2
    // Predicated region
    $region21: #{tpu_custom_call.1} parent=5 // pred_check
      %p196 = pneg %p195
    $region22: #{tpu_custom_call.1} parent=5 // pred_check_branch
      %198 = sbr.rel (%p196) target = $region24
    $region23: #{tpu_custom_call.1} parent=5 // pred_region
      // Predicated region
      $region25: #{tpu_custom_call.1} parent=23 // pred_check
        %p199 = pneg %p46
      $region26: #{tpu_custom_call.1} parent=23 // pred_check_branch
        %201 = sbr.rel (%p199) target = $region28
      $region27: #{tpu_custom_call.1} parent=23 // pred_region
        %p202 = scmp.lt.s32.totalorder %s19, 1
        %s203 = scalar_select %p202, %s19, 1
        %p204 = scmp.lt.s32.totalorder %s20, 0
        %s205 = scalar_select %p204, %s20, 0
        %s206 = sadd.s32 %s205, %s203
        %s207 = smul.addr %s206, 8
        %s208 = scalar_lea.vmem %s0, %s207
      $region28: #{tpu_custom_call.1} parent=23 // pred_fallthru
        _
    $region24: #{tpu_custom_call.1} parent=5 // pred_fallthru
      _
    %p209 = scmp.le.s32.totalorder 1, %s12
    %p210 = scmp.lt.s32.totalorder %s12, 3
    %p211 = pnand %p209, %p210
    %p212 = pneg %p211
    // Predicated region
    $region29: #{tpu_custom_call.1} parent=5 // pred_check
      _
    $region30: #{tpu_custom_call.1} parent=5 // pred_check_branch
      %214 = sbr.rel (%p211) target = $region32
    $region31: #{tpu_custom_call.1} parent=5 // pred_region
      %s215 = ssub.s32 %s12, 1
      %p216 = scmp.lt.s32.totalorder %s21, 1
      %s217 = scalar_select %p216, %s21, 1
      %p218 = scmp.lt.s32.totalorder %s22, 0
      %s219 = scalar_select %p218, %s22, 0
      %s220 = sadd.s32 %s219, %s217
      %s221 = smul.addr %s220, 8
      %s222 = scalar_lea.vmem %s0, %s221
      %p223 = pneg %p52
      %p224 = pneg %p49
      %p225 = pneg %p73
      %p226 = pneg %p70
      %p227 = pneg %p94
      %p228 = pneg %p91
      %p229 = pneg %p122
      %p230 = pneg %p119
      %p231 = scmp.lt.s32.totalorder %s21, 1
      %s232 = scalar_select %p231, %s21, 1
      %p233 = scmp.lt.s32.totalorder %s22, 0
      %s234 = scalar_select %p233, %s22, 0
      %s235 = smul.addr %s232, 16
      %s236 = sadd.s32 %s234, %s235
      %s237 = smul.addr %s236, 8
      %s238 = scalar_lea.vmem %s3, %s237
      %p239 = pneg %p148
      %p240 = pneg %p145
      %p241 = scmp.lt.s32.totalorder %s21, 1
      %s242 = scalar_select %p241, %s21, 1
      %s243 = smul.addr %s242, 16
      %s244 = smul.addr %s243, 8
      %s245 = scalar_lea.vmem %s4, %s244
      %p246 = pneg %p174
      %p247 = pneg %p171
      %p248 = scmp.lt.s32.totalorder %s21, 1
      %s249 = scalar_select %p248, %s21, 1
      %s250 = smul.addr %s249, 16
      %s251 = smul.addr %s250, 8
      %s252 = scalar_lea.vmem %s5, %s251
      %p253 = scmp.lt.s32.totalorder %s21, 1
      %s254 = scalar_select %p253, %s21, 1
      %p255 = scmp.lt.s32.totalorder %s22, 0
      %s256 = scalar_select %p255, %s22, 0
      %s257 = sadd.s32 %s256, %s254
      %s258 = smul.addr %s257, 8
      %s259 = scalar_lea.vmem %s0, %s258
      %p260 = scmp.lt.s32.totalorder %s21, 1
      %s261 = scalar_select %p260, %s21, 1
      %p262 = scmp.lt.s32.totalorder %s22, 0
      %s263 = scalar_select %p262, %s22, 0
      %s264 = smul.addr %s261, 16
      %s265 = sadd.s32 %s263, %s264
      %s266 = smul.addr %s265, 8
      %s267 = scalar_lea.vmem %s3, %s266
      %p268 = scmp.lt.s32.totalorder %s21, 1
      %s269 = scalar_select %p268, %s21, 1
      %s270 = smul.addr %s269, 16
      %s271 = smul.addr %s270, 8
      %s272 = scalar_lea.vmem %s4, %s271
      %p273 = scmp.lt.s32.totalorder %s21, 1
      %s274 = scalar_select %p273, %s21, 1
      %s275 = smul.addr %s274, 16
      %s276 = smul.addr %s275, 8
      %s277 = scalar_lea.vmem %s5, %s276
      %p278 = scmp.eq.s32.totalorder %s22, 0
      // Predicated region
      $region33: #{tpu_custom_call.1} parent=31 // pred_check
        %p279 = pneg %p278
      $region34: #{tpu_custom_call.1} parent=31 // pred_check_branch
        %281 = sbr.rel (%p279) target = $region36
      $region35: #{tpu_custom_call.1} parent=31 // pred_region
        %vm282 = vcmask 7168
        %283 = vst.msk [vmem:[%s272] sm:$0xff] %vm282, 0.0
        %284 = vst.msk [vmem:[%s272 + $0x8] sm:$0xff] %vm282, 0.0
        %285 = vst.msk [vmem:[%s272 + $0x10] sm:$0xff] %vm282, 0.0
        %286 = vst.msk [vmem:[%s272 + $0x18] sm:$0xff] %vm282, 0.0
        %287 = vst.msk [vmem:[%s272 + $0x20] sm:$0xff] %vm282, 0.0
        %288 = vst.msk [vmem:[%s272 + $0x28] sm:$0xff] %vm282, 0.0
        %289 = vst.msk [vmem:[%s272 + $0x30] sm:$0xff] %vm282, 0.0
        %290 = vst.msk [vmem:[%s272 + $0x38] sm:$0xff] %vm282, 0.0
        %291 = vst.msk [vmem:[%s272 + $0x40] sm:$0xff] %vm282, 0.0
        %292 = vst.msk [vmem:[%s272 + $0x48] sm:$0xff] %vm282, 0.0
        %293 = vst.msk [vmem:[%s272 + $0x50] sm:$0xff] %vm282, 0.0
        %294 = vst.msk [vmem:[%s272 + $0x58] sm:$0xff] %vm282, 0.0
        %295 = vst.msk [vmem:[%s272 + $0x60] sm:$0xff] %vm282, 0.0
        %296 = vst.msk [vmem:[%s272 + $0x68] sm:$0xff] %vm282, 0.0
        %297 = vst.msk [vmem:[%s272 + $0x70] sm:$0xff] %vm282, 0.0
        %298 = vst.msk [vmem:[%s272 + $0x78] sm:$0xff] %vm282, 0.0
        %299 = vst.msk [vmem:[%s277] sm:$0xff] %vm282, 0.0
        %300 = vst.msk [vmem:[%s277 + $0x8] sm:$0xff] %vm282, 0.0
        %301 = vst.msk [vmem:[%s277 + $0x10] sm:$0xff] %vm282, 0.0
        %302 = vst.msk [vmem:[%s277 + $0x18] sm:$0xff] %vm282, 0.0
        %303 = vst.msk [vmem:[%s277 + $0x20] sm:$0xff] %vm282, 0.0
        %304 = vst.msk [vmem:[%s277 + $0x28] sm:$0xff] %vm282, 0.0
        %305 = vst.msk [vmem:[%s277 + $0x30] sm:$0xff] %vm282, 0.0
        %306 = vst.msk [vmem:[%s277 + $0x38] sm:$0xff] %vm282, 0.0
        %307 = vst.msk [vmem:[%s277 + $0x40] sm:$0xff] %vm282, 0.0
        %308 = vst.msk [vmem:[%s277 + $0x48] sm:$0xff] %vm282, 0.0
        %309 = vst.msk [vmem:[%s277 + $0x50] sm:$0xff] %vm282, 0.0
        %310 = vst.msk [vmem:[%s277 + $0x58] sm:$0xff] %vm282, 0.0
        %311 = vst.msk [vmem:[%s277 + $0x60] sm:$0xff] %vm282, 0.0
        %312 = vst.msk [vmem:[%s277 + $0x68] sm:$0xff] %vm282, 0.0
        %313 = vst.msk [vmem:[%s277 + $0x70] sm:$0xff] %vm282, 0.0
        %314 = vst.msk [vmem:[%s277 + $0x78] sm:$0xff] %vm282, 0.0
      $region36: #{tpu_custom_call.1} parent=31 // pred_fallthru
        _
      %v315 = vld [vmem:[%s259] sm:$0xff]
      %317 = vrot.lane.b32.xlu0 %v315, 127
      %v318 = vpop.permute.xlu0 %317
      %320 = vrot.lane.b32.xlu0 %v315, 126
      %v321 = vpop.permute.xlu0 %320
      %v323 = vld [vmem:[%s1] sm:$0xff]
      %v324 = vld [vmem:[%s1 + $0x8] sm:$0xff]
      %v325 = vld [vmem:[%s1 + $0x10] sm:$0xff]
      %v326 = vld [vmem:[%s1 + $0x18] sm:$0xff]
      %v327 = vld [vmem:[%s1 + $0x20] sm:$0xff]
      %v328 = vld [vmem:[%s1 + $0x28] sm:$0xff]
      %v329 = vld [vmem:[%s1 + $0x30] sm:$0xff]
      %v330 = vld [vmem:[%s1 + $0x38] sm:$0xff]
      %v331 = vld [vmem:[%s1 + $0x40] sm:$0xff]
      %v332 = vld [vmem:[%s1 + $0x48] sm:$0xff]
      %v333 = vld [vmem:[%s1 + $0x50] sm:$0xff]
      %v334 = vld [vmem:[%s1 + $0x58] sm:$0xff]
      %v335 = vld [vmem:[%s1 + $0x60] sm:$0xff]
      %v336 = vld [vmem:[%s1 + $0x68] sm:$0xff]
      %v337 = vld [vmem:[%s1 + $0x70] sm:$0xff]
      %v338 = vld [vmem:[%s1 + $0x78] sm:$0xff]
      %v339 = vld [vmem:[%s2] sm:$0xff]
      %v340 = vld [vmem:[%s2 + $0x8] sm:$0xff]
      %v341 = vld [vmem:[%s2 + $0x10] sm:$0xff]
      %v342 = vld [vmem:[%s2 + $0x18] sm:$0xff]
      %v343 = vld [vmem:[%s2 + $0x20] sm:$0xff]
      %v344 = vld [vmem:[%s2 + $0x28] sm:$0xff]
      %v345 = vld [vmem:[%s2 + $0x30] sm:$0xff]
      %v346 = vld [vmem:[%s2 + $0x38] sm:$0xff]
      %v347 = vld [vmem:[%s2 + $0x40] sm:$0xff]
      %v348 = vld [vmem:[%s2 + $0x48] sm:$0xff]
      %v349 = vld [vmem:[%s2 + $0x50] sm:$0xff]
      %v350 = vld [vmem:[%s2 + $0x58] sm:$0xff]
      %v351 = vld [vmem:[%s2 + $0x60] sm:$0xff]
      %v352 = vld [vmem:[%s2 + $0x68] sm:$0xff]
      %v353 = vld [vmem:[%s2 + $0x70] sm:$0xff]
      %v354 = vld [vmem:[%s2 + $0x78] sm:$0xff]
      %356 = vset.pattern.permute.xlu0 0
      %357 = vperm.xlu0 %356, %v339
      %v358 = vpop.permute.xlu0 %357
      %361 = vset.pattern.permute.xlu0 0
      %362 = vperm.xlu0 %361, %v340
      %v363 = vpop.permute.xlu0 %362
      %366 = vset.pattern.permute.xlu0 0
      %367 = vperm.xlu0 %366, %v341
      %v368 = vpop.permute.xlu0 %367
      %371 = vset.pattern.permute.xlu0 0
      %372 = vperm.xlu0 %371, %v342
      %v373 = vpop.permute.xlu0 %372
      %376 = vset.pattern.permute.xlu0 0
      %377 = vperm.xlu0 %376, %v343
      %v378 = vpop.permute.xlu0 %377
      %381 = vset.pattern.permute.xlu0 0
      %382 = vperm.xlu0 %381, %v344
      %v383 = vpop.permute.xlu0 %382
      %386 = vset.pattern.permute.xlu0 0
      %387 = vperm.xlu0 %386, %v345
      %v388 = vpop.permute.xlu0 %387
      %391 = vset.pattern.permute.xlu0 0
      %392 = vperm.xlu0 %391, %v346
      %v393 = vpop.permute.xlu0 %392
      %396 = vset.pattern.permute.xlu0 0
      %397 = vperm.xlu0 %396, %v347
      %v398 = vpop.permute.xlu0 %397
      %401 = vset.pattern.permute.xlu0 0
      %402 = vperm.xlu0 %401, %v348
      %v403 = vpop.permute.xlu0 %402
      %406 = vset.pattern.permute.xlu0 0
      %407 = vperm.xlu0 %406, %v349
      %v408 = vpop.permute.xlu0 %407
      %411 = vset.pattern.permute.xlu0 0
      %412 = vperm.xlu0 %411, %v350
      %v413 = vpop.permute.xlu0 %412
      %416 = vset.pattern.permute.xlu0 0
      %417 = vperm.xlu0 %416, %v351
      %v418 = vpop.permute.xlu0 %417
      %421 = vset.pattern.permute.xlu0 0
      %422 = vperm.xlu0 %421, %v352
      %v423 = vpop.permute.xlu0 %422
      %426 = vset.pattern.permute.xlu0 0
      %427 = vperm.xlu0 %426, %v353
      %v428 = vpop.permute.xlu0 %427
      %431 = vset.pattern.permute.xlu0 0
      %432 = vperm.xlu0 %431, %v354
      %v433 = vpop.permute.xlu0 %432
      %vm435 = vcmask 195584
      %v437 = vsel %vm435, %v323, 0
      %v440 = vsel %vm435, %v324, 0
      %v443 = vsel %vm435, %v325, 0
      %v446 = vsel %vm435, %v326, 0
      %v449 = vsel %vm435, %v327, 0
      %v452 = vsel %vm435, %v328, 0
      %v455 = vsel %vm435, %v329, 0
      %v458 = vsel %vm435, %v330, 0
      %v461 = vsel %vm435, %v331, 0
      %v464 = vsel %vm435, %v332, 0
      %v467 = vsel %vm435, %v333, 0
      %v470 = vsel %vm435, %v334, 0
      %v473 = vsel %vm435, %v335, 0
      %v476 = vsel %vm435, %v336, 0
      %v479 = vsel %vm435, %v337, 0
      %v482 = vsel %vm435, %v338, 0
      %484 = vmatpush.msra.mxu0 0.0
      %485 = vmatpush.msra.mxu0 0.0
      %486 = vmatpush.msra.mxu0 0.0
      %487 = vmatpush.msra.mxu0 0.0
      %488 = vmatpush.msra.mxu0 0.0
      %489 = vmatpush.msra.mxu0 0.0
      %490 = vmatpush.msra.mxu0 0.0
      %491 = vmatpush.msra.mxu0 0.0
      %492 = vmatpush.msra.mxu0 0.0
      %493 = vmatpush.msra.mxu0 0.0
      %494 = vmatpush.msra.mxu0 0.0
      %495 = vmatpush.msra.mxu0 0.0
      %496 = vmatpush.msra.mxu0 0.0
      %497 = vmatpush.msra.mxu0 %v321
      %498 = vmatpush.msra.mxu0 %v318
      %499 = vmatpush.msra.mxu0 %v315
      %500 = vmatmul.f32.gmra.mxu0 %v437
      %v501 = vpop.f32.mrf.mxu0
      %v502 = vadd.f32 %v358, %v501
      %503 = vmatmul.f32.gmra.mxu0 %v440
      %v504 = vpop.f32.mrf.mxu0
      %v505 = vadd.f32 %v363, %v504
      %506 = vmatmul.f32.gmra.mxu0 %v443
      %v507 = vpop.f32.mrf.mxu0
      %v508 = vadd.f32 %v368, %v507
      %509 = vmatmul.f32.gmra.mxu0 %v446
      %v510 = vpop.f32.mrf.mxu0
      %v511 = vadd.f32 %v373, %v510
      %512 = vmatmul.f32.gmra.mxu0 %v449
      %v513 = vpop.f32.mrf.mxu0
      %v514 = vadd.f32 %v378, %v513
      %515 = vmatmul.f32.gmra.mxu0 %v452
      %v516 = vpop.f32.mrf.mxu0
      %v517 = vadd.f32 %v383, %v516
      %518 = vmatmul.f32.gmra.mxu0 %v455
      %v519 = vpop.f32.mrf.mxu0
      %v520 = vadd.f32 %v388, %v519
      %521 = vmatmul.f32.gmra.mxu0 %v458
      %v522 = vpop.f32.mrf.mxu0
      %v523 = vadd.f32 %v393, %v522
      %524 = vmatmul.f32.gmra.mxu0 %v461
      %v525 = vpop.f32.mrf.mxu0
      %v526 = vadd.f32 %v398, %v525
      %527 = vmatmul.f32.gmra.mxu0 %v464
      %v528 = vpop.f32.mrf.mxu0
      %v529 = vadd.f32 %v403, %v528
      %530 = vmatmul.f32.gmra.mxu0 %v467
      %v531 = vpop.f32.mrf.mxu0
      %v532 = vadd.f32 %v408, %v531
      %533 = vmatmul.f32.gmra.mxu0 %v470
      %v534 = vpop.f32.mrf.mxu0
      %v535 = vadd.f32 %v413, %v534
      %536 = vmatmul.f32.gmra.mxu0 %v473
      %v537 = vpop.f32.mrf.mxu0
      %v538 = vadd.f32 %v418, %v537
      %539 = vmatmul.f32.gmra.mxu0 %v476
      %v540 = vpop.f32.mrf.mxu0
      %v541 = vadd.f32 %v423, %v540
      %542 = vmatmul.f32.gmra.mxu0 %v479
      %v543 = vpop.f32.mrf.mxu0
      %v544 = vadd.f32 %v428, %v543
      %545 = vmatmul.f32.gmra.mxu0 %v482
      %v546 = vpop.f32.mrf.mxu0
      %v547 = vadd.f32 %v433, %v546
      %548 = vdwg.mxu0
      %v549 = vmax.f32 %v502, 0.0
      %v550 = vmax.f32 %v505, 0.0
      %v551 = vmax.f32 %v508, 0.0
      %v552 = vmax.f32 %v511, 0.0
      %v553 = vmax.f32 %v514, 0.0
      %v554 = vmax.f32 %v517, 0.0
      %v555 = vmax.f32 %v520, 0.0
      %v556 = vmax.f32 %v523, 0.0
      %v557 = vmax.f32 %v526, 0.0
      %v558 = vmax.f32 %v529, 0.0
      %v559 = vmax.f32 %v532, 0.0
      %v560 = vmax.f32 %v535, 0.0
      %v561 = vmax.f32 %v538, 0.0
      %v562 = vmax.f32 %v541, 0.0
      %v563 = vmax.f32 %v544, 0.0
      %v564 = vmax.f32 %v547, 0.0
      %p565 = scmp.lt.s32.totalorder %s22, 0
      // Predicated region
      $region37: #{tpu_custom_call.1} parent=31 // pred_check
        %p566 = pneg %p565
      $region38: #{tpu_custom_call.1} parent=31 // pred_check_branch
        %568 = sbr.rel (%p566) target = $region40
      $region39: #{tpu_custom_call.1} parent=31 // pred_region
        %v569 = vld [vmem:[%s272] sm:$0xff]
        %v570 = vld [vmem:[%s272 + $0x8] sm:$0xff]
        %v571 = vld [vmem:[%s272 + $0x10] sm:$0xff]
        %v572 = vld [vmem:[%s272 + $0x18] sm:$0xff]
        %v573 = vld [vmem:[%s272 + $0x20] sm:$0xff]
        %v574 = vld [vmem:[%s272 + $0x28] sm:$0xff]
        %v575 = vld [vmem:[%s272 + $0x30] sm:$0xff]
        %v576 = vld [vmem:[%s272 + $0x38] sm:$0xff]
        %v577 = vld [vmem:[%s272 + $0x40] sm:$0xff]
        %v578 = vld [vmem:[%s272 + $0x48] sm:$0xff]
        %v579 = vld [vmem:[%s272 + $0x50] sm:$0xff]
        %v580 = vld [vmem:[%s272 + $0x58] sm:$0xff]
        %v581 = vld [vmem:[%s272 + $0x60] sm:$0xff]
        %v582 = vld [vmem:[%s272 + $0x68] sm:$0xff]
        %v583 = vld [vmem:[%s272 + $0x70] sm:$0xff]
        %v584 = vld [vmem:[%s272 + $0x78] sm:$0xff]
        %vm585 = vcmask 130048
        %v586 = vsel %vm585, %v549, 0.0
        %587 = vadd.xlane.f32.xlu0 %v586
        %v588 = vpop.xlane.xlu0 %587
        %v589 = vsel %vm585, %v550, 0.0
        %590 = vadd.xlane.f32.xlu0 %v589
        %v591 = vpop.xlane.xlu0 %590
        %v592 = vsel %vm585, %v551, 0.0
        %593 = vadd.xlane.f32.xlu0 %v592
        %v594 = vpop.xlane.xlu0 %593
        %v595 = vsel %vm585, %v552, 0.0
        %596 = vadd.xlane.f32.xlu0 %v595
        %v597 = vpop.xlane.xlu0 %596
        %v598 = vsel %vm585, %v553, 0.0
        %599 = vadd.xlane.f32.xlu0 %v598
        %v600 = vpop.xlane.xlu0 %599
        %v601 = vsel %vm585, %v554, 0.0
        %602 = vadd.xlane.f32.xlu0 %v601
        %v603 = vpop.xlane.xlu0 %602
        %v604 = vsel %vm585, %v555, 0.0
        %605 = vadd.xlane.f32.xlu0 %v604
        %v606 = vpop.xlane.xlu0 %605
        %v607 = vsel %vm585, %v556, 0.0
        %608 = vadd.xlane.f32.xlu0 %v607
        %v609 = vpop.xlane.xlu0 %608
        %v610 = vsel %vm585, %v557, 0.0
        %611 = vadd.xlane.f32.xlu0 %v610
        %v612 = vpop.xlane.xlu0 %611
        %v613 = vsel %vm585, %v558, 0.0
        %614 = vadd.xlane.f32.xlu0 %v613
        %v615 = vpop.xlane.xlu0 %614
        %v616 = vsel %vm585, %v559, 0.0
        %617 = vadd.xlane.f32.xlu0 %v616
        %v618 = vpop.xlane.xlu0 %617
        %v619 = vsel %vm585, %v560, 0.0
        %620 = vadd.xlane.f32.xlu0 %v619
        %v621 = vpop.xlane.xlu0 %620
        %v622 = vsel %vm585, %v561, 0.0
        %623 = vadd.xlane.f32.xlu0 %v622
        %v624 = vpop.xlane.xlu0 %623
        %v625 = vsel %vm585, %v562, 0.0
        %626 = vadd.xlane.f32.xlu0 %v625
        %v627 = vpop.xlane.xlu0 %626
        %v628 = vsel %vm585, %v563, 0.0
        %629 = vadd.xlane.f32.xlu0 %v628
        %v630 = vpop.xlane.xlu0 %629
        %v631 = vsel %vm585, %v564, 0.0
        %632 = vadd.xlane.f32.xlu0 %v631
        %v633 = vpop.xlane.xlu0 %632
        %v634 = vadd.f32 %v569, %v588
        %v635 = vadd.f32 %v570, %v591
        %v636 = vadd.f32 %v571, %v594
        %v637 = vadd.f32 %v572, %v597
        %v638 = vadd.f32 %v573, %v600
        %v639 = vadd.f32 %v574, %v603
        %v640 = vadd.f32 %v575, %v606
        %v641 = vadd.f32 %v576, %v609
        %v642 = vadd.f32 %v577, %v612
        %v643 = vadd.f32 %v578, %v615
        %v644 = vadd.f32 %v579, %v618
        %v645 = vadd.f32 %v580, %v621
        %v646 = vadd.f32 %v581, %v624
        %v647 = vadd.f32 %v582, %v627
        %v648 = vadd.f32 %v583, %v630
        %v649 = vadd.f32 %v584, %v633
        %vm650 = vcmask 7168
        %651 = vst.msk [vmem:[%s272] sm:$0xff] %vm650, %v634
        %652 = vst.msk [vmem:[%s272 + $0x8] sm:$0xff] %vm650, %v635
        %653 = vst.msk [vmem:[%s272 + $0x10] sm:$0xff] %vm650, %v636
        %654 = vst.msk [vmem:[%s272 + $0x18] sm:$0xff] %vm650, %v637
        %655 = vst.msk [vmem:[%s272 + $0x20] sm:$0xff] %vm650, %v638
        %656 = vst.msk [vmem:[%s272 + $0x28] sm:$0xff] %vm650, %v639
        %657 = vst.msk [vmem:[%s272 + $0x30] sm:$0xff] %vm650, %v640
        %658 = vst.msk [vmem:[%s272 + $0x38] sm:$0xff] %vm650, %v641
        %659 = vst.msk [vmem:[%s272 + $0x40] sm:$0xff] %vm650, %v642
        %660 = vst.msk [vmem:[%s272 + $0x48] sm:$0xff] %vm650, %v643
        %661 = vst.msk [vmem:[%s272 + $0x50] sm:$0xff] %vm650, %v644
        %662 = vst.msk [vmem:[%s272 + $0x58] sm:$0xff] %vm650, %v645
        %663 = vst.msk [vmem:[%s272 + $0x60] sm:$0xff] %vm650, %v646
        %664 = vst.msk [vmem:[%s272 + $0x68] sm:$0xff] %vm650, %v647
        %665 = vst.msk [vmem:[%s272 + $0x70] sm:$0xff] %vm650, %v648
        %666 = vst.msk [vmem:[%s272 + $0x78] sm:$0xff] %vm650, %v649
        %v667 = vld [vmem:[%s277] sm:$0xff]
        %v668 = vld [vmem:[%s277 + $0x8] sm:$0xff]
        %v669 = vld [vmem:[%s277 + $0x10] sm:$0xff]
        %v670 = vld [vmem:[%s277 + $0x18] sm:$0xff]
        %v671 = vld [vmem:[%s277 + $0x20] sm:$0xff]
        %v672 = vld [vmem:[%s277 + $0x28] sm:$0xff]
        %v673 = vld [vmem:[%s277 + $0x30] sm:$0xff]
        %v674 = vld [vmem:[%s277 + $0x38] sm:$0xff]
        %v675 = vld [vmem:[%s277 + $0x40] sm:$0xff]
        %v676 = vld [vmem:[%s277 + $0x48] sm:$0xff]
        %v677 = vld [vmem:[%s277 + $0x50] sm:$0xff]
        %v678 = vld [vmem:[%s277 + $0x58] sm:$0xff]
        %v679 = vld [vmem:[%s277 + $0x60] sm:$0xff]
        %v680 = vld [vmem:[%s277 + $0x68] sm:$0xff]
        %v681 = vld [vmem:[%s277 + $0x70] sm:$0xff]
        %v682 = vld [vmem:[%s277 + $0x78] sm:$0xff]
        %v683 = vmul.f32 %v549, %v549
        %v684 = vmul.f32 %v550, %v550
        %v685 = vmul.f32 %v551, %v551
        %v686 = vmul.f32 %v552, %v552
        %v687 = vmul.f32 %v553, %v553
        %v688 = vmul.f32 %v554, %v554
        %v689 = vmul.f32 %v555, %v555
        %v690 = vmul.f32 %v556, %v556
        %v691 = vmul.f32 %v557, %v557
        %v692 = vmul.f32 %v558, %v558
        %v693 = vmul.f32 %v559, %v559
        %v694 = vmul.f32 %v560, %v560
        %v695 = vmul.f32 %v561, %v561
        %v696 = vmul.f32 %v562, %v562
        %v697 = vmul.f32 %v563, %v563
        %v698 = vmul.f32 %v564, %v564
        %v699 = vsel %vm585, %v683, 0.0
        %700 = vadd.xlane.f32.xlu0 %v699
        %v701 = vpop.xlane.xlu0 %700
        %v702 = vsel %vm585, %v684, 0.0
        %703 = vadd.xlane.f32.xlu0 %v702
        %v704 = vpop.xlane.xlu0 %703
        %v705 = vsel %vm585, %v685, 0.0
        %706 = vadd.xlane.f32.xlu0 %v705
        %v707 = vpop.xlane.xlu0 %706
        %v708 = vsel %vm585, %v686, 0.0
        %709 = vadd.xlane.f32.xlu0 %v708
        %v710 = vpop.xlane.xlu0 %709
        %v711 = vsel %vm585, %v687, 0.0
        %712 = vadd.xlane.f32.xlu0 %v711
        %v713 = vpop.xlane.xlu0 %712
        %v714 = vsel %vm585, %v688, 0.0
        %715 = vadd.xlane.f32.xlu0 %v714
        %v716 = vpop.xlane.xlu0 %715
        %v717 = vsel %vm585, %v689, 0.0
        %718 = vadd.xlane.f32.xlu0 %v717
        %v719 = vpop.xlane.xlu0 %718
        %v720 = vsel %vm585, %v690, 0.0
        %721 = vadd.xlane.f32.xlu0 %v720
        %v722 = vpop.xlane.xlu0 %721
        %v723 = vsel %vm585, %v691, 0.0
        %724 = vadd.xlane.f32.xlu0 %v723
        %v725 = vpop.xlane.xlu0 %724
        %v726 = vsel %vm585, %v692, 0.0
        %727 = vadd.xlane.f32.xlu0 %v726
        %v728 = vpop.xlane.xlu0 %727
        %v729 = vsel %vm585, %v693, 0.0
        %730 = vadd.xlane.f32.xlu0 %v729
        %v731 = vpop.xlane.xlu0 %730
        %v732 = vsel %vm585, %v694, 0.0
        %733 = vadd.xlane.f32.xlu0 %v732
        %v734 = vpop.xlane.xlu0 %733
        %v735 = vsel %vm585, %v695, 0.0
        %736 = vadd.xlane.f32.xlu0 %v735
        %v737 = vpop.xlane.xlu0 %736
        %v738 = vsel %vm585, %v696, 0.0
        %739 = vadd.xlane.f32.xlu0 %v738
        %v740 = vpop.xlane.xlu0 %739
        %v741 = vsel %vm585, %v697, 0.0
        %742 = vadd.xlane.f32.xlu0 %v741
        %v743 = vpop.xlane.xlu0 %742
        %v744 = vsel %vm585, %v698, 0.0
        %745 = vadd.xlane.f32.xlu0 %v744
        %v746 = vpop.xlane.xlu0 %745
        %v747 = vadd.f32 %v667, %v701
        %v748 = vadd.f32 %v668, %v704
        %v749 = vadd.f32 %v669, %v707
        %v750 = vadd.f32 %v670, %v710
        %v751 = vadd.f32 %v671, %v713
        %v752 = vadd.f32 %v672, %v716
        %v753 = vadd.f32 %v673, %v719
        %v754 = vadd.f32 %v674, %v722
        %v755 = vadd.f32 %v675, %v725
        %v756 = vadd.f32 %v676, %v728
        %v757 = vadd.f32 %v677, %v731
        %v758 = vadd.f32 %v678, %v734
        %v759 = vadd.f32 %v679, %v737
        %v760 = vadd.f32 %v680, %v740
        %v761 = vadd.f32 %v681, %v743
        %v762 = vadd.f32 %v682, %v746
        %763 = vst.msk [vmem:[%s277] sm:$0xff] %vm650, %v747
        %764 = vst.msk [vmem:[%s277 + $0x8] sm:$0xff] %vm650, %v748
        %765 = vst.msk [vmem:[%s277 + $0x10] sm:$0xff] %vm650, %v749
        %766 = vst.msk [vmem:[%s277 + $0x18] sm:$0xff] %vm650, %v750
        %767 = vst.msk [vmem:[%s277 + $0x20] sm:$0xff] %vm650, %v751
        %768 = vst.msk [vmem:[%s277 + $0x28] sm:$0xff] %vm650, %v752
        %769 = vst.msk [vmem:[%s277 + $0x30] sm:$0xff] %vm650, %v753
        %770 = vst.msk [vmem:[%s277 + $0x38] sm:$0xff] %vm650, %v754
        %771 = vst.msk [vmem:[%s277 + $0x40] sm:$0xff] %vm650, %v755
        %772 = vst.msk [vmem:[%s277 + $0x48] sm:$0xff] %vm650, %v756
        %773 = vst.msk [vmem:[%s277 + $0x50] sm:$0xff] %vm650, %v757
        %774 = vst.msk [vmem:[%s277 + $0x58] sm:$0xff] %vm650, %v758
        %775 = vst.msk [vmem:[%s277 + $0x60] sm:$0xff] %vm650, %v759
        %776 = vst.msk [vmem:[%s277 + $0x68] sm:$0xff] %vm650, %v760
        %777 = vst.msk [vmem:[%s277 + $0x70] sm:$0xff] %vm650, %v761
        %778 = vst.msk [vmem:[%s277 + $0x78] sm:$0xff] %vm650, %v762
      $region40: #{tpu_custom_call.1} parent=31 // pred_fallthru
        _
      // Predicated region
      $region41: #{tpu_custom_call.1} parent=31 // pred_check
        %p779 = pneg %p278
      $region42: #{tpu_custom_call.1} parent=31 // pred_check_branch
        %781 = sbr.rel (%p779) target = $region44
      $region43: #{tpu_custom_call.1} parent=31 // pred_region
        %v782 = vlaneseq
        %v783 = vand.u32 %v782, 127
        %s784 = smul.u32 %s22, 16
        %v785 = vstv %s784
        %v786 = vadd.s32 %v783, %v785
        %vm787 = vcmp.lt.s32.totalorder %v786, 16
        %v788 = vsel %vm787, 1, 0
        %vm789 = vcmp.eq.s32.totalorder %v788, 1
        %v790 = vsel %vm789, %v549, 0.0
        %v791 = vsel %vm789, %v550, 0.0
        %v792 = vsel %vm789, %v551, 0.0
        %v793 = vsel %vm789, %v552, 0.0
        %v794 = vsel %vm789, %v553, 0.0
        %v795 = vsel %vm789, %v554, 0.0
        %v796 = vsel %vm789, %v555, 0.0
        %v797 = vsel %vm789, %v556, 0.0
        %v798 = vsel %vm789, %v557, 0.0
        %v799 = vsel %vm789, %v558, 0.0
        %v800 = vsel %vm789, %v559, 0.0
        %v801 = vsel %vm789, %v560, 0.0
        %v802 = vsel %vm789, %v561, 0.0
        %v803 = vsel %vm789, %v562, 0.0
        %v804 = vsel %vm789, %v563, 0.0
        %v805 = vsel %vm789, %v564, 0.0
        %v806 = vld [vmem:[%s272] sm:$0xff]
        %v807 = vld [vmem:[%s272 + $0x8] sm:$0xff]
        %v808 = vld [vmem:[%s272 + $0x10] sm:$0xff]
        %v809 = vld [vmem:[%s272 + $0x18] sm:$0xff]
        %v810 = vld [vmem:[%s272 + $0x20] sm:$0xff]
        %v811 = vld [vmem:[%s272 + $0x28] sm:$0xff]
        %v812 = vld [vmem:[%s272 + $0x30] sm:$0xff]
        %v813 = vld [vmem:[%s272 + $0x38] sm:$0xff]
        %v814 = vld [vmem:[%s272 + $0x40] sm:$0xff]
        %v815 = vld [vmem:[%s272 + $0x48] sm:$0xff]
        %v816 = vld [vmem:[%s272 + $0x50] sm:$0xff]
        %v817 = vld [vmem:[%s272 + $0x58] sm:$0xff]
        %v818 = vld [vmem:[%s272 + $0x60] sm:$0xff]
        %v819 = vld [vmem:[%s272 + $0x68] sm:$0xff]
        %v820 = vld [vmem:[%s272 + $0x70] sm:$0xff]
        %v821 = vld [vmem:[%s272 + $0x78] sm:$0xff]
        %vm822 = vcmask 130048
        %v823 = vsel %vm822, %v790, 0.0
        %824 = vadd.xlane.f32.xlu0 %v823
        %v825 = vpop.xlane.xlu0 %824
        %v826 = vsel %vm822, %v791, 0.0
        %827 = vadd.xlane.f32.xlu0 %v826
        %v828 = vpop.xlane.xlu0 %827
        %v829 = vsel %vm822, %v792, 0.0
        %830 = vadd.xlane.f32.xlu0 %v829
        %v831 = vpop.xlane.xlu0 %830
        %v832 = vsel %vm822, %v793, 0.0
        %833 = vadd.xlane.f32.xlu0 %v832
        %v834 = vpop.xlane.xlu0 %833
        %v835 = vsel %vm822, %v794, 0.0
        %836 = vadd.xlane.f32.xlu0 %v835
        %v837 = vpop.xlane.xlu0 %836
        %v838 = vsel %vm822, %v795, 0.0
        %839 = vadd.xlane.f32.xlu0 %v838
        %v840 = vpop.xlane.xlu0 %839
        %v841 = vsel %vm822, %v796, 0.0
        %842 = vadd.xlane.f32.xlu0 %v841
        %v843 = vpop.xlane.xlu0 %842
        %v844 = vsel %vm822, %v797, 0.0
        %845 = vadd.xlane.f32.xlu0 %v844
        %v846 = vpop.xlane.xlu0 %845
        %v847 = vsel %vm822, %v798, 0.0
        %848 = vadd.xlane.f32.xlu0 %v847
        %v849 = vpop.xlane.xlu0 %848
        %v850 = vsel %vm822, %v799, 0.0
        %851 = vadd.xlane.f32.xlu0 %v850
        %v852 = vpop.xlane.xlu0 %851
        %v853 = vsel %vm822, %v800, 0.0
        %854 = vadd.xlane.f32.xlu0 %v853
        %v855 = vpop.xlane.xlu0 %854
        %v856 = vsel %vm822, %v801, 0.0
        %857 = vadd.xlane.f32.xlu0 %v856
        %v858 = vpop.xlane.xlu0 %857
        %v859 = vsel %vm822, %v802, 0.0
        %860 = vadd.xlane.f32.xlu0 %v859
        %v861 = vpop.xlane.xlu0 %860
        %v862 = vsel %vm822, %v803, 0.0
        %863 = vadd.xlane.f32.xlu0 %v862
        %v864 = vpop.xlane.xlu0 %863
        %v865 = vsel %vm822, %v804, 0.0
        %866 = vadd.xlane.f32.xlu0 %v865
        %v867 = vpop.xlane.xlu0 %866
        %v868 = vsel %vm822, %v805, 0.0
        %869 = vadd.xlane.f32.xlu0 %v868
        %v870 = vpop.xlane.xlu0 %869
        %v871 = vadd.f32 %v806, %v825
        %v872 = vadd.f32 %v807, %v828
        %v873 = vadd.f32 %v808, %v831
        %v874 = vadd.f32 %v809, %v834
        %v875 = vadd.f32 %v810, %v837
        %v876 = vadd.f32 %v811, %v840
        %v877 = vadd.f32 %v812, %v843
        %v878 = vadd.f32 %v813, %v846
        %v879 = vadd.f32 %v814, %v849
        %v880 = vadd.f32 %v815, %v852
        %v881 = vadd.f32 %v816, %v855
        %v882 = vadd.f32 %v817, %v858
        %v883 = vadd.f32 %v818, %v861
        %v884 = vadd.f32 %v819, %v864
        %v885 = vadd.f32 %v820, %v867
        %v886 = vadd.f32 %v821, %v870
        %vm887 = vcmask 7168
        %888 = vst.msk [vmem:[%s272] sm:$0xff] %vm887, %v871
        %889 = vst.msk [vmem:[%s272 + $0x8] sm:$0xff] %vm887, %v872
        %890 = vst.msk [vmem:[%s272 + $0x10] sm:$0xff] %vm887, %v873
        %891 = vst.msk [vmem:[%s272 + $0x18] sm:$0xff] %vm887, %v874
        %892 = vst.msk [vmem:[%s272 + $0x20] sm:$0xff] %vm887, %v875
        %893 = vst.msk [vmem:[%s272 + $0x28] sm:$0xff] %vm887, %v876
        %894 = vst.msk [vmem:[%s272 + $0x30] sm:$0xff] %vm887, %v877
        %895 = vst.msk [vmem:[%s272 + $0x38] sm:$0xff] %vm887, %v878
        %896 = vst.msk [vmem:[%s272 + $0x40] sm:$0xff] %vm887, %v879
        %897 = vst.msk [vmem:[%s272 + $0x48] sm:$0xff] %vm887, %v880
        %898 = vst.msk [vmem:[%s272 + $0x50] sm:$0xff] %vm887, %v881
        %899 = vst.msk [vmem:[%s272 + $0x58] sm:$0xff] %vm887, %v882
        %900 = vst.msk [vmem:[%s272 + $0x60] sm:$0xff] %vm887, %v883
        %901 = vst.msk [vmem:[%s272 + $0x68] sm:$0xff] %vm887, %v884
        %902 = vst.msk [vmem:[%s272 + $0x70] sm:$0xff] %vm887, %v885
        %903 = vst.msk [vmem:[%s272 + $0x78] sm:$0xff] %vm887, %v886
        %v904 = vld [vmem:[%s277] sm:$0xff]
        %v905 = vld [vmem:[%s277 + $0x8] sm:$0xff]
        %v906 = vld [vmem:[%s277 + $0x10] sm:$0xff]
        %v907 = vld [vmem:[%s277 + $0x18] sm:$0xff]
        %v908 = vld [vmem:[%s277 + $0x20] sm:$0xff]
        %v909 = vld [vmem:[%s277 + $0x28] sm:$0xff]
        %v910 = vld [vmem:[%s277 + $0x30] sm:$0xff]
        %v911 = vld [vmem:[%s277 + $0x38] sm:$0xff]
        %v912 = vld [vmem:[%s277 + $0x40] sm:$0xff]
        %v913 = vld [vmem:[%s277 + $0x48] sm:$0xff]
        %v914 = vld [vmem:[%s277 + $0x50] sm:$0xff]
        %v915 = vld [vmem:[%s277 + $0x58] sm:$0xff]
        %v916 = vld [vmem:[%s277 + $0x60] sm:$0xff]
        %v917 = vld [vmem:[%s277 + $0x68] sm:$0xff]
        %v918 = vld [vmem:[%s277 + $0x70] sm:$0xff]
        %v919 = vld [vmem:[%s277 + $0x78] sm:$0xff]
        %v920 = vmul.f32 %v790, %v790
        %v921 = vmul.f32 %v791, %v791
        %v922 = vmul.f32 %v792, %v792
        %v923 = vmul.f32 %v793, %v793
        %v924 = vmul.f32 %v794, %v794
        %v925 = vmul.f32 %v795, %v795
        %v926 = vmul.f32 %v796, %v796
        %v927 = vmul.f32 %v797, %v797
        %v928 = vmul.f32 %v798, %v798
        %v929 = vmul.f32 %v799, %v799
        %v930 = vmul.f32 %v800, %v800
        %v931 = vmul.f32 %v801, %v801
        %v932 = vmul.f32 %v802, %v802
        %v933 = vmul.f32 %v803, %v803
        %v934 = vmul.f32 %v804, %v804
        %v935 = vmul.f32 %v805, %v805
        %v936 = vsel %vm822, %v920, 0.0
        %937 = vadd.xlane.f32.xlu0 %v936
        %v938 = vpop.xlane.xlu0 %937
        %v939 = vsel %vm822, %v921, 0.0
        %940 = vadd.xlane.f32.xlu0 %v939
        %v941 = vpop.xlane.xlu0 %940
        %v942 = vsel %vm822, %v922, 0.0
        %943 = vadd.xlane.f32.xlu0 %v942
        %v944 = vpop.xlane.xlu0 %943
        %v945 = vsel %vm822, %v923, 0.0
        %946 = vadd.xlane.f32.xlu0 %v945
        %v947 = vpop.xlane.xlu0 %946
        %v948 = vsel %vm822, %v924, 0.0
        %949 = vadd.xlane.f32.xlu0 %v948
        %v950 = vpop.xlane.xlu0 %949
        %v951 = vsel %vm822, %v925, 0.0
        %952 = vadd.xlane.f32.xlu0 %v951
        %v953 = vpop.xlane.xlu0 %952
        %v954 = vsel %vm822, %v926, 0.0
        %955 = vadd.xlane.f32.xlu0 %v954
        %v956 = vpop.xlane.xlu0 %955
        %v957 = vsel %vm822, %v927, 0.0
        %958 = vadd.xlane.f32.xlu0 %v957
        %v959 = vpop.xlane.xlu0 %958
        %v960 = vsel %vm822, %v928, 0.0
        %961 = vadd.xlane.f32.xlu0 %v960
        %v962 = vpop.xlane.xlu0 %961
        %v963 = vsel %vm822, %v929, 0.0
        %964 = vadd.xlane.f32.xlu0 %v963
        %v965 = vpop.xlane.xlu0 %964
        %v966 = vsel %vm822, %v930, 0.0
        %967 = vadd.xlane.f32.xlu0 %v966
        %v968 = vpop.xlane.xlu0 %967
        %v969 = vsel %vm822, %v931, 0.0
        %970 = vadd.xlane.f32.xlu0 %v969
        %v971 = vpop.xlane.xlu0 %970
        %v972 = vsel %vm822, %v932, 0.0
        %973 = vadd.xlane.f32.xlu0 %v972
        %v974 = vpop.xlane.xlu0 %973
        %v975 = vsel %vm822, %v933, 0.0
        %976 = vadd.xlane.f32.xlu0 %v975
        %v977 = vpop.xlane.xlu0 %976
        %v978 = vsel %vm822, %v934, 0.0
        %979 = vadd.xlane.f32.xlu0 %v978
        %v980 = vpop.xlane.xlu0 %979
        %v981 = vsel %vm822, %v935, 0.0
        %982 = vadd.xlane.f32.xlu0 %v981
        %v983 = vpop.xlane.xlu0 %982
        %v984 = vadd.f32 %v904, %v938
        %v985 = vadd.f32 %v905, %v941
        %v986 = vadd.f32 %v906, %v944
        %v987 = vadd.f32 %v907, %v947
        %v988 = vadd.f32 %v908, %v950
        %v989 = vadd.f32 %v909, %v953
        %v990 = vadd.f32 %v910, %v956
        %v991 = vadd.f32 %v911, %v959
        %v992 = vadd.f32 %v912, %v962
        %v993 = vadd.f32 %v913, %v965
        %v994 = vadd.f32 %v914, %v968
        %v995 = vadd.f32 %v915, %v971
        %v996 = vadd.f32 %v916, %v974
        %v997 = vadd.f32 %v917, %v977
        %v998 = vadd.f32 %v918, %v980
        %v999 = vadd.f32 %v919, %v983
        %1000 = vst.msk [vmem:[%s277] sm:$0xff] %vm887, %v984
        %1001 = vst.msk [vmem:[%s277 + $0x8] sm:$0xff] %vm887, %v985
        %1002 = vst.msk [vmem:[%s277 + $0x10] sm:$0xff] %vm887, %v986
        %1003 = vst.msk [vmem:[%s277 + $0x18] sm:$0xff] %vm887, %v987
        %1004 = vst.msk [vmem:[%s277 + $0x20] sm:$0xff] %vm887, %v988
        %1005 = vst.msk [vmem:[%s277 + $0x28] sm:$0xff] %vm887, %v989
        %1006 = vst.msk [vmem:[%s277 + $0x30] sm:$0xff] %vm887, %v990
        %1007 = vst.msk [vmem:[%s277 + $0x38] sm:$0xff] %vm887, %v991
        %1008 = vst.msk [vmem:[%s277 + $0x40] sm:$0xff] %vm887, %v992
        %1009 = vst.msk [vmem:[%s277 + $0x48] sm:$0xff] %vm887, %v993
        %1010 = vst.msk [vmem:[%s277 + $0x50] sm:$0xff] %vm887, %v994
        %1011 = vst.msk [vmem:[%s277 + $0x58] sm:$0xff] %vm887, %v995
        %1012 = vst.msk [vmem:[%s277 + $0x60] sm:$0xff] %vm887, %v996
        %1013 = vst.msk [vmem:[%s277 + $0x68] sm:$0xff] %vm887, %v997
        %1014 = vst.msk [vmem:[%s277 + $0x70] sm:$0xff] %vm887, %v998
        %1015 = vst.msk [vmem:[%s277 + $0x78] sm:$0xff] %vm887, %v999
      $region44: #{tpu_custom_call.1} parent=31 // pred_fallthru
        _
      %vm1016 = vcmask 130048
      %1017 = vst.msk [vmem:[%s267] sm:$0xff] %vm1016, %v549
      %1018 = vst.msk [vmem:[%s267 + $0x8] sm:$0xff] %vm1016, %v550
      %1019 = vst.msk [vmem:[%s267 + $0x10] sm:$0xff] %vm1016, %v551
      %1020 = vst.msk [vmem:[%s267 + $0x18] sm:$0xff] %vm1016, %v552
      %1021 = vst.msk [vmem:[%s267 + $0x20] sm:$0xff] %vm1016, %v553
      %1022 = vst.msk [vmem:[%s267 + $0x28] sm:$0xff] %vm1016, %v554
      %1023 = vst.msk [vmem:[%s267 + $0x30] sm:$0xff] %vm1016, %v555
      %1024 = vst.msk [vmem:[%s267 + $0x38] sm:$0xff] %vm1016, %v556
      %1025 = vst.msk [vmem:[%s267 + $0x40] sm:$0xff] %vm1016, %v557
      %1026 = vst.msk [vmem:[%s267 + $0x48] sm:$0xff] %vm1016, %v558
      %1027 = vst.msk [vmem:[%s267 + $0x50] sm:$0xff] %vm1016, %v559
      %1028 = vst.msk [vmem:[%s267 + $0x58] sm:$0xff] %vm1016, %v560
      %1029 = vst.msk [vmem:[%s267 + $0x60] sm:$0xff] %vm1016, %v561
      %1030 = vst.msk [vmem:[%s267 + $0x68] sm:$0xff] %vm1016, %v562
      %1031 = vst.msk [vmem:[%s267 + $0x70] sm:$0xff] %vm1016, %v563
      %1032 = vst.msk [vmem:[%s267 + $0x78] sm:$0xff] %vm1016, %v564
      %p1033 = scmp.lt.s32.totalorder %s21, 1
      %s1034 = scalar_select %p1033, %s21, 1
      %p1035 = scmp.lt.s32.totalorder %s22, 0
      %s1036 = scalar_select %p1035, %s22, 0
      %s1037 = smul.addr %s1034, 16
      %s1038 = sadd.s32 %s1036, %s1037
      %s1039 = smul.addr %s1038, 8
      %s1040 = scalar_lea.vmem %s3, %s1039
      %p1041 = scmp.lt.s32.totalorder %s21, 1
      %s1042 = scalar_select %p1041, %s21, 1
      %s1043 = smul.addr %s1042, 16
      %s1044 = smul.addr %s1043, 8
      %s1045 = scalar_lea.vmem %s4, %s1044
      %p1046 = scmp.lt.s32.totalorder %s21, 1
      %s1047 = scalar_select %p1046, %s21, 1
      %s1048 = smul.addr %s1047, 16
      %s1049 = smul.addr %s1048, 8
      %s1050 = scalar_lea.vmem %s5, %s1049
      // Predicated region
      $region45: #{tpu_custom_call.1} parent=31 // pred_check
        %p1051 = pneg %p119
      $region46: #{tpu_custom_call.1} parent=31 // pred_check_branch
        %1053 = sbr.rel (%p1051) target = $region48
      $region47: #{tpu_custom_call.1} parent=31 // pred_region
        _
      $region48: #{tpu_custom_call.1} parent=31 // pred_fallthru
        _
      // Predicated region
      $region49: #{tpu_custom_call.1} parent=31 // pred_check
        %p1054 = pneg %p145
      $region50: #{tpu_custom_call.1} parent=31 // pred_check_branch
        %1056 = sbr.rel (%p1054) target = $region52
      $region51: #{tpu_custom_call.1} parent=31 // pred_region
        _
      $region52: #{tpu_custom_call.1} parent=31 // pred_fallthru
        _
      // Predicated region
      $region53: #{tpu_custom_call.1} parent=31 // pred_check
        %p1057 = pneg %p171
      $region54: #{tpu_custom_call.1} parent=31 // pred_check_branch
        %1059 = sbr.rel (%p1057) target = $region56
      $region55: #{tpu_custom_call.1} parent=31 // pred_region
        _
      $region56: #{tpu_custom_call.1} parent=31 // pred_fallthru
        _
    $region32: #{tpu_custom_call.1} parent=5 // pred_fallthru
      _
    %p1060 = scmp.le.s32.totalorder 2, %s12
    // Predicated region
    $region57: #{tpu_custom_call.1} parent=5 // pred_check
      %p1061 = pneg %p1060
    $region58: #{tpu_custom_call.1} parent=5 // pred_check_branch
      %1063 = sbr.rel (%p1061) target = $region60
    $region59: #{tpu_custom_call.1} parent=5 // pred_region
      %s1064 = ssub.s32 %s12, 2
      // Predicated region
      $region61: #{tpu_custom_call.1} parent=59 // pred_check
        %p1065 = pneg %p125
      $region62: #{tpu_custom_call.1} parent=59 // pred_check_branch
        %1067 = sbr.rel (%p1065) target = $region64
      $region63: #{tpu_custom_call.1} parent=59 // pred_region
        %p1068 = scmp.lt.s32.totalorder %s23, 1
        %s1069 = scalar_select %p1068, %s23, 1
        %p1070 = scmp.lt.s32.totalorder %s24, 0
        %s1071 = scalar_select %p1070, %s24, 0
        %s1072 = smul.addr %s1069, 16
        %s1073 = sadd.s32 %s1071, %s1072
        %s1074 = smul.addr %s1073, 8
        %s1075 = scalar_lea.vmem %s3, %s1074
      $region64: #{tpu_custom_call.1} parent=59 // pred_fallthru
        _
      // Predicated region
      $region65: #{tpu_custom_call.1} parent=59 // pred_check
        %p1076 = pneg %p151
      $region66: #{tpu_custom_call.1} parent=59 // pred_check_branch
        %1078 = sbr.rel (%p1076) target = $region68
      $region67: #{tpu_custom_call.1} parent=59 // pred_region
        %p1079 = scmp.lt.s32.totalorder %s23, 1
        %s1080 = scalar_select %p1079, %s23, 1
        %s1081 = smul.addr %s1080, 16
        %s1082 = smul.addr %s1081, 8
        %s1083 = scalar_lea.vmem %s4, %s1082
      $region68: #{tpu_custom_call.1} parent=59 // pred_fallthru
        _
      // Predicated region
      $region69: #{tpu_custom_call.1} parent=59 // pred_check
        %p1084 = pneg %p177
      $region70: #{tpu_custom_call.1} parent=59 // pred_check_branch
        %1086 = sbr.rel (%p1084) target = $region72
      $region71: #{tpu_custom_call.1} parent=59 // pred_region
        %p1087 = scmp.lt.s32.totalorder %s23, 1
        %s1088 = scalar_select %p1087, %s23, 1
        %s1089 = smul.addr %s1088, 16
        %s1090 = smul.addr %s1089, 8
        %s1091 = scalar_lea.vmem %s5, %s1090
      $region72: #{tpu_custom_call.1} parent=59 // pred_fallthru
        _
    $region60: #{tpu_custom_call.1} parent=5 // pred_fallthru
      _
  $region6: #{tpu_custom_call.1} parent=0 // loop_footer
    %s16 = sadd.s32 1, %s12
  $region7: #{tpu_custom_call.1} parent=0 // loop_footer_branch
    %11 = sbr.rel target = $region3
  $region8: #{tpu_custom_call.1} parent=0 // loop_exit
    _

</llo_original>
